<compile_context>
chip_gen: v7x
topology: tpu7x:2x2x1
jax: 0.10.0
libtpu: 0.0.40
codegen_flags: <defaults>
</compile_context>

<pallas_src>
import functools

import jax
import jax.numpy as jnp
from jax.experimental import pallas as pl
from jax.experimental.pallas import tpu as pltpu

N_CLASSES = 2
N_FEATURES = 8
HIDDEN = 32
BATCH = 4

C_PAD = 128          # lane-dense padded class dim
DEFAULT_TILE_B = 256  # batch tile (rows) once the batch is large enough


def _round_up(x, m):
    return (x + m - 1) // m * m


def net_kernel(x1_ref, x2_ref, w1a_ref, w1b_ref, b1_ref, w2_ref, b2_ref, o_ref):
    """One batch tile, weights resident in VMEM.

    x1_ref : [TB, F]      first input tile
    x2_ref : [TB, F]      second input tile
    w1a_ref: [F, H]       i2h weight rows for input1   (in, out layout)
    w1b_ref: [F, H]       i2h weight rows for input2
    b1_ref : [1, H]       i2h bias
    w2_ref : [H, C_PAD]   h2o weight, class dim zero-padded to 128 lanes
    b2_ref : [1, C_PAD]   h2o bias, padded classes = -1e30
    o_ref  : [TB, C_PAD]  log-softmax output (real classes in [:, :C])
    """
    # Linear 1 (split-concat trick) + ReLU  -- both partial dots hit the MXU
    # with f32 accumulation; mathematically identical to cat(x1,x2) @ W1.
    h = (
        jnp.dot(x1_ref[...], w1a_ref[...], preferred_element_type=jnp.float32)
        + jnp.dot(x2_ref[...], w1b_ref[...], preferred_element_type=jnp.float32)
        + b1_ref[...]
    )
    h = jnp.maximum(h, 0.0)

    # Linear 2 into a full 128-lane output tile. Padded classes carry a -1e30
    # bias, so exp(shifted) underflows to 0 there and the normalizer over the
    # real classes is exact.
    logits = (
        jnp.dot(h, w2_ref[...], preferred_element_type=jnp.float32) + b2_ref[...]
    )

    # Numerically-stable log_softmax over the last axis.
    m = jnp.max(logits, axis=-1, keepdims=True)
    shifted = logits - m
    lse = jnp.log(jnp.sum(jnp.exp(shifted), axis=-1, keepdims=True))
    o_ref[...] = (shifted - lse).astype(o_ref.dtype)


@functools.partial(jax.jit, static_argnames=("tile_b",))
def net_forward(input1, input2, w1, b1, w2, b2, *, tile_b=DEFAULT_TILE_B):
    """Forward pass. input1/input2: [B, F]; w1: [2F, H]; b1: [H]; w2: [H, C]; b2: [C]."""
    B, F = input1.shape
    H = w1.shape[1]
    C = w2.shape[1]

    # --- trace-time parameter layout prep (zero-cost slices / tiny pads) ----
    w1a = w1[:F]                       # [F, H]  rows that multiply input1
    w1b = w1[F:]                       # [F, H]  rows that multiply input2
    b1r = b1.reshape(1, H)

    w2p = jnp.zeros((H, C_PAD), w2.dtype).at[:, :C].set(w2)
    b2p = jnp.full((1, C_PAD), -1e30, b2.dtype).at[:, :C].set(b2.reshape(1, C))

    # --- batch padding / tiling --------------------------------------------
    B_pad = _round_up(B, 8)            # sublane alignment
    tb = min(tile_b, B_pad)
    B_pad = _round_up(B_pad, tb)       # multiple of the batch tile
    if B_pad != B:
        pad = ((0, B_pad - B), (0, 0))
        input1 = jnp.pad(input1, pad)
        input2 = jnp.pad(input2, pad)

    grid = (B_pad // tb,)

    def resident(shape):
        # Weights/biases: same full block on every grid step -> stay in VMEM.
        return pl.BlockSpec(shape, lambda i: (0, 0))

    out = pl.pallas_call(
        net_kernel,
        out_shape=jax.ShapeDtypeStruct((B_pad, C_PAD), jnp.float32),
        grid=grid,
        in_specs=[
            pl.BlockSpec((tb, F), lambda i: (i, 0)),   # input1 tile
            pl.BlockSpec((tb, F), lambda i: (i, 0)),   # input2 tile
            resident((F, H)),                          # w1a
            resident((F, H)),                          # w1b
            resident((1, H)),                          # b1
            resident((H, C_PAD)),                      # w2 (padded)
            resident((1, C_PAD)),                      # b2 (padded)
        ],
        out_specs=pl.BlockSpec((tb, C_PAD), lambda i: (i, 0)),
        compiler_params=pltpu.CompilerParams(
            dimension_semantics=("parallel",),
        ),
    )(input1, input2, w1a, w1b, b1r, w2p, b2p)

    return out[:B, :C]


def init_params(key):
    """Deterministic parameter init (mimics nn.Linear's uniform fan-in init)."""
    k1, k2, k3, k4 = jax.random.split(key, 4)
    in1 = 2 * N_FEATURES
    bound1 = 1.0 / jnp.sqrt(in1)
    w1 = jax.random.uniform(k1, (in1, HIDDEN), jnp.float32, -bound1, bound1)
    b1 = jax.random.uniform(k2, (HIDDEN,), jnp.float32, -bound1, bound1)
    bound2 = 1.0 / jnp.sqrt(HIDDEN)
    w2 = jax.random.uniform(k3, (HIDDEN, N_CLASSES), jnp.float32, -bound2, bound2)
    b2 = jax.random.uniform(k4, (N_CLASSES,), jnp.float32, -bound2, bound2)
    return w1, b1, w2, b2


def reference_forward(input1, input2, w1, b1, w2, b2):
    """Pure-JAX reference (same math as the PyTorch module)."""
    x = jnp.concatenate((input1, input2), axis=-1)
    h = jnp.maximum(x @ w1 + b1, 0.0)
    logits = h @ w2 + b2
    return jax.nn.log_softmax(logits, axis=-1)


if __name__ == "__main__":
    key = jax.random.PRNGKey(0)
    kp, kx1, kx2, ky1, ky2 = jax.random.split(key, 5)

    w1, b1, w2, b2 = init_params(kp)

    # Small-batch case (matches the module's typical usage).
    input1 = jax.random.normal(kx1, (BATCH, N_FEATURES), jnp.float32)
    input2 = jax.random.normal(kx2, (BATCH, N_FEATURES), jnp.float32)
    out = jax.block_until_ready(net_forward(input1, input2, w1, b1, w2, b2))
    ref = reference_forward(input1, input2, w1, b1, w2, b2)
    assert out.shape == (BATCH, N_CLASSES)
    assert jnp.allclose(out, ref, atol=1e-5, rtol=1e-5), "mismatch vs reference (B=4)"

    # Larger batch exercises the multi-step grid + padding path.
    B2 = 300
    big1 = jax.random.normal(ky1, (B2, N_FEATURES), jnp.float32)
    big2 = jax.random.normal(ky2, (B2, N_FEATURES), jnp.float32)
    out2 = jax.block_until_ready(net_forward(big1, big2, w1, b1, w2, b2))
    ref2 = reference_forward(big1, big2, w1, b1, w2, b2)
    assert out2.shape == (B2, N_CLASSES)
    assert jnp.allclose(out2, ref2, atol=1e-5, rtol=1e-5), "mismatch vs reference (B=300)"

    print("KERNEL_OK")
</pallas_src>

<mosaic_0001>
module attributes {stable_mosaic.version = 11 : i64} {
  func.func @net_kernel(%arg0: i32, %arg1: memref<8x8xf32, #tpu.memory_space<vmem>>, %arg2: memref<8x8xf32, #tpu.memory_space<vmem>>, %arg3: memref<8x32xf32, #tpu.memory_space<vmem>>, %arg4: memref<8x32xf32, #tpu.memory_space<vmem>>, %arg5: memref<1x32xf32, #tpu.memory_space<vmem>>, %arg6: memref<32x128xf32, #tpu.memory_space<vmem>>, %arg7: memref<1x128xf32, #tpu.memory_space<vmem>>, %arg8: memref<8x128xf32, #tpu.memory_space<vmem>>) attributes {dimension_semantics = [#tpu.dimension_semantics<parallel>], iteration_bounds = array<i64: 1>, scalar_prefetch = 0 : i64, scratch_operands = 0 : i64, tpu.core_type = #tpu.core_type<tc>, window_params = [{transform_indices = @transform_0, window_bounds = array<i64: 8, 8>}, {transform_indices = @transform_1, window_bounds = array<i64: 8, 8>}, {pipeline_mode = #tpu.pipeline_mode<synchronous>, transform_indices = @transform_2, window_bounds = array<i64: 8, 32>}, {pipeline_mode = #tpu.pipeline_mode<synchronous>, transform_indices = @transform_3, window_bounds = array<i64: 8, 32>}, {pipeline_mode = #tpu.pipeline_mode<synchronous>, transform_indices = @transform_4, window_bounds = array<i64: 1, 32>}, {pipeline_mode = #tpu.pipeline_mode<synchronous>, transform_indices = @transform_5, window_bounds = array<i64: 32, 128>}, {pipeline_mode = #tpu.pipeline_mode<synchronous>, transform_indices = @transform_6, window_bounds = array<i64: 1, 128>}, {transform_indices = @transform_7, window_bounds = array<i64: 8, 128>}]} {
    %c0 = arith.constant 0 : index
    %c0_0 = arith.constant 0 : index
    %0 = vector.load %arg1[%c0, %c0_0] : memref<8x8xf32, #tpu.memory_space<vmem>>, vector<8x8xf32>
    %c0_1 = arith.constant 0 : index
    %c0_2 = arith.constant 0 : index
    %1 = vector.load %arg3[%c0_1, %c0_2] : memref<8x32xf32, #tpu.memory_space<vmem>>, vector<8x32xf32>
    %cst = arith.constant dense<0.000000e+00> : vector<8x32xf32>
    %2 = tpu.matmul %0, %1, %cst {dimension_numbers = #tpu.dot_dimension_numbers<[1], [0], [0], [1], [0, 0, 1, 1], [], []>} : vector<8x8xf32>, vector<8x32xf32>, vector<8x32xf32> -> vector<8x32xf32>
    %c0_3 = arith.constant 0 : index
    %c0_4 = arith.constant 0 : index
    %3 = vector.load %arg2[%c0_3, %c0_4] : memref<8x8xf32, #tpu.memory_space<vmem>>, vector<8x8xf32>
    %c0_5 = arith.constant 0 : index
    %c0_6 = arith.constant 0 : index
    %4 = vector.load %arg4[%c0_5, %c0_6] : memref<8x32xf32, #tpu.memory_space<vmem>>, vector<8x32xf32>
    %cst_7 = arith.constant dense<0.000000e+00> : vector<8x32xf32>
    %5 = tpu.matmul %3, %4, %cst_7 {dimension_numbers = #tpu.dot_dimension_numbers<[1], [0], [0], [1], [0, 0, 1, 1], [], []>} : vector<8x8xf32>, vector<8x32xf32>, vector<8x32xf32> -> vector<8x32xf32>
    %6 = arith.addf %2, %5 : vector<8x32xf32>
    %c0_8 = arith.constant 0 : index
    %c0_9 = arith.constant 0 : index
    %7 = vector.load %arg5[%c0_8, %c0_9] : memref<1x32xf32, #tpu.memory_space<vmem>>, vector<1x32xf32>
    %8 = vector.broadcast %7 : vector<1x32xf32> to vector<8x32xf32>
    %9 = arith.addf %6, %8 : vector<8x32xf32>
    %cst_10 = arith.constant 0.000000e+00 : f32
    %10 = vector.broadcast %cst_10 : f32 to vector<8x32xf32>
    %11 = arith.maximumf %9, %10 : vector<8x32xf32>
    %c0_11 = arith.constant 0 : index
    %c0_12 = arith.constant 0 : index
    %12 = vector.load %arg6[%c0_11, %c0_12] : memref<32x128xf32, #tpu.memory_space<vmem>>, vector<32x128xf32>
    %cst_13 = arith.constant dense<0.000000e+00> : vector<8x128xf32>
    %13 = tpu.matmul %11, %12, %cst_13 {dimension_numbers = #tpu.dot_dimension_numbers<[1], [0], [0], [1], [0, 0, 1, 1], [], []>} : vector<8x32xf32>, vector<32x128xf32>, vector<8x128xf32> -> vector<8x128xf32>
    %c0_14 = arith.constant 0 : index
    %c0_15 = arith.constant 0 : index
    %14 = vector.load %arg7[%c0_14, %c0_15] : memref<1x128xf32, #tpu.memory_space<vmem>>, vector<1x128xf32>
    %15 = vector.broadcast %14 : vector<1x128xf32> to vector<8x128xf32>
    %16 = arith.addf %13, %15 : vector<8x128xf32>
    %cst_16 = arith.constant dense<0xFF800000> : vector<8xf32>
    %17 = vector.multi_reduction <maximumf>, %16, %cst_16 [1] : vector<8x128xf32> to vector<8xf32>
    %18 = vector.shape_cast %17 : vector<8xf32> to vector<8x1xf32>
    %19 = vector.broadcast %18 : vector<8x1xf32> to vector<8x128xf32>
    %20 = arith.subf %16, %19 : vector<8x128xf32>
    %21 = math.exp %20 : vector<8x128xf32>
    %cst_17 = arith.constant dense<0.000000e+00> : vector<8xf32>
    %22 = vector.multi_reduction <add>, %21, %cst_17 [1] : vector<8x128xf32> to vector<8xf32>
    %23 = vector.shape_cast %22 : vector<8xf32> to vector<8x1xf32>
    %24 = math.log %23 : vector<8x1xf32>
    %25 = vector.broadcast %24 : vector<8x1xf32> to vector<8x128xf32>
    %26 = arith.subf %20, %25 : vector<8x128xf32>
    %c0_18 = arith.constant 0 : index
    %c0_19 = arith.constant 0 : index
    %27 = vector.load %arg8[%c0_18, %c0_19] : memref<8x128xf32, #tpu.memory_space<vmem>>, vector<8x128xf32>
    tpu.vector_store %arg8[%c0_18, %c0_19], %26 {strides = array<i32>} : memref<8x128xf32, #tpu.memory_space<vmem>>, vector<8x128xf32>,
    return
  }
  func.func @transform_0(%arg0: i32) -> (i32, i32) {
    %c0_i32 = arith.constant 0 : i32
    %c0_i32_0 = arith.constant 0 : i32
    return %arg0, %c0_i32 : i32, i32
  }
  func.func @transform_1(%arg0: i32) -> (i32, i32) {
    %c0_i32 = arith.constant 0 : i32
    %c0_i32_0 = arith.constant 0 : i32
    return %arg0, %c0_i32 : i32, i32
  }
  func.func @transform_2(%arg0: i32) -> (i32, i32) {
    %c0_i32 = arith.constant 0 : i32
    %c0_i32_0 = arith.constant 0 : i32
    %c0_i32_1 = arith.constant 0 : i32
    return %c0_i32, %c0_i32_0 : i32, i32
  }
  func.func @transform_3(%arg0: i32) -> (i32, i32) {
    %c0_i32 = arith.constant 0 : i32
    %c0_i32_0 = arith.constant 0 : i32
    %c0_i32_1 = arith.constant 0 : i32
    return %c0_i32, %c0_i32_0 : i32, i32
  }
  func.func @transform_4(%arg0: i32) -> (i32, i32) {
    %c0_i32 = arith.constant 0 : i32
    %c0_i32_0 = arith.constant 0 : i32
    %c0_i32_1 = arith.constant 0 : i32
    return %c0_i32, %c0_i32_0 : i32, i32
  }
  func.func @transform_5(%arg0: i32) -> (i32, i32) {
    %c0_i32 = arith.constant 0 : i32
    %c0_i32_0 = arith.constant 0 : i32
    %c0_i32_1 = arith.constant 0 : i32
    return %c0_i32, %c0_i32_0 : i32, i32
  }
  func.func @transform_6(%arg0: i32) -> (i32, i32) {
    %c0_i32 = arith.constant 0 : i32
    %c0_i32_0 = arith.constant 0 : i32
    %c0_i32_1 = arith.constant 0 : i32
    return %c0_i32, %c0_i32_0 : i32, i32
  }
  func.func @transform_7(%arg0: i32) -> (i32, i32) {
    %c0_i32 = arith.constant 0 : i32
    %c0_i32_0 = arith.constant 0 : i32
    return %arg0, %c0_i32 : i32, i32
  }
}

</mosaic_0001>

<llo_original>
// kernel: net_forward.1
$region0: #{net_forward.1}
  #allocation0 [shape = 'u32[]', space=smem, size = 0x4, offset = 0x4, fixed_abs, tag = 'smem constant byte address 0x4 - core index']
  #allocation1 [shape = 'u32[144,128]{1,0:T(1,128)}', space=vmem, size = 0x12000, scoped, tag = 'internal scratch']
  %s0 = inlined_call_operand.vmem [shape: f32[8,8], index: 0, kind: input, shape index: {}]
  %s1 = inlined_call_operand.vmem [shape: f32[8,8], index: 1, kind: input, shape index: {}]
  %s2 = inlined_call_operand.vmem [shape: f32[8,32], index: 2, kind: input, shape index: {}]
  %s3 = inlined_call_operand.vmem [shape: f32[8,32], index: 3, kind: input, shape index: {}]
  %s4 = inlined_call_operand.vmem [shape: f32[1,32], index: 4, kind: input, shape index: {}]
  %s5 = inlined_call_operand.vmem [shape: f32[32,128], index: 5, kind: input, shape index: {}]
  %s6 = inlined_call_operand.vmem [shape: f32[1,128], index: 6, kind: input, shape index: {}]
  %s7 = inlined_call_operand.vmem [shape: f32[8,128], index: 7, kind: output, shape index: {}]
  %s8 = sld [smem:[#allocation0]]
  $region38: #{net_forward.1} parent=0
    _
  %s10 = ssub.s32 1, %s8
  %s11 = scalar_select 0, %s10, %s8
  // Predicated region
  $region2: #{net_forward.1} parent=0 // pred_check
    _
  $region3: #{net_forward.1} parent=0 // pred_check_branch
    %13 = sbr.rel (0) target = $region5
  $region4: #{net_forward.1} parent=0 // pred_region
    _
  $region5: #{net_forward.1} parent=0 // pred_fallthru
    _
  // Predicated region
  $region6: #{net_forward.1} parent=0 // pred_check
    _
  $region7: #{net_forward.1} parent=0 // pred_check_branch
    %15 = sbr.rel (0) target = $region9
  $region8: #{net_forward.1} parent=0 // pred_region
    _
  $region9: #{net_forward.1} parent=0 // pred_fallthru
    _
  // Predicated region
  $region10: #{net_forward.1} parent=0 // pred_check
    _
  $region11: #{net_forward.1} parent=0 // pred_check_branch
    %17 = sbr.rel (0) target = $region13
  $region12: #{net_forward.1} parent=0 // pred_region
    _
  $region13: #{net_forward.1} parent=0 // pred_fallthru
    _
  // Predicated region
  $region14: #{net_forward.1} parent=0 // pred_check
    _
  $region15: #{net_forward.1} parent=0 // pred_check_branch
    %19 = sbr.rel (0) target = $region17
  $region16: #{net_forward.1} parent=0 // pred_region
    _
  $region17: #{net_forward.1} parent=0 // pred_fallthru
    _
  // Predicated region
  $region18: #{net_forward.1} parent=0 // pred_check
    _
  $region19: #{net_forward.1} parent=0 // pred_check_branch
    %21 = sbr.rel (0) target = $region21
  $region20: #{net_forward.1} parent=0 // pred_region
    _
  $region21: #{net_forward.1} parent=0 // pred_fallthru
    _
  // Predicated region
  $region22: #{net_forward.1} parent=0 // pred_check
    _
  $region23: #{net_forward.1} parent=0 // pred_check_branch
    %23 = sbr.rel (0) target = $region25
  $region24: #{net_forward.1} parent=0 // pred_region
    _
  $region25: #{net_forward.1} parent=0 // pred_fallthru
    _
  // Predicated region
  $region26: #{net_forward.1} parent=0 // pred_check
    _
  $region27: #{net_forward.1} parent=0 // pred_check_branch
    %25 = sbr.rel (0) target = $region29
  $region28: #{net_forward.1} parent=0 // pred_region
    _
  $region29: #{net_forward.1} parent=0 // pred_fallthru
    _
  %v26 = vld [vmem:[%s0] sm:$0xff]
  %v27 = vld [vmem:[%s2] sm:$0xff]
  %v28 = vld [vmem:[%s1] sm:$0xff]
  %v29 = vld [vmem:[%s3] sm:$0xff]
  %vm30 = vcmask 64512
  %v32 = vsel %vm30, %v28, 0
  %34 = vmatprep.subr.mxu0 0.0
  %35 = vmatpush1.msra.mxu0 %v29
  %36 = vmatprep.subr.mxu0 0.0
  %37 = vmatpush1.msra.mxu0 0.0
  %38 = vmatprep.subr.mxu0 0.0
  %39 = vmatpush1.msra.mxu0 0.0
  %40 = vmatprep.subr.mxu0 0.0
  %41 = vmatpush1.msra.mxu0 0.0
  %42 = vmatprep.subr.mxu0 0.0
  %43 = vmatpush1.msra.mxu0 0.0
  %44 = vmatprep.subr.mxu0 0.0
  %45 = vmatpush1.msra.mxu0 0.0
  %46 = vmatprep.subr.mxu0 0.0
  %47 = vmatpush1.msra.mxu0 0.0
  %48 = vmatprep.subr.mxu0 0.0
  %49 = vmatpush1.msra.mxu0 0.0
  %50 = vmatprep.subr.mxu0 0.0
  %51 = vmatpush1.msra.mxu0 0.0
  %52 = vmatprep.subr.mxu0 0.0
  %53 = vmatpush1.msra.mxu0 0.0
  %54 = vmatprep.subr.mxu0 0.0
  %55 = vmatpush1.msra.mxu0 0.0
  %56 = vmatprep.subr.mxu0 0.0
  %57 = vmatpush1.msra.mxu0 0.0
  %58 = vmatprep.subr.mxu0 0.0
  %59 = vmatpush1.msra.mxu0 0.0
  %60 = vmatprep.subr.mxu0 0.0
  %61 = vmatpush1.msra.mxu0 0.0
  %62 = vmatprep.subr.mxu0 0.0
  %63 = vmatpush1.msra.mxu0 0.0
  %64 = vmatprep.subr.mxu0 0.0
  %65 = vmatpush1.msra.mxu0 0.0
  %66 = vmatprep.subr.mxu0 0.0
  %67 = vmatpush1.msra.mxu0 0.0
  %68 = vmatprep.subr.mxu0 0.0
  %69 = vmatpush1.msra.mxu0 0.0
  %70 = vmatprep.subr.mxu0 0.0
  %71 = vmatpush1.msra.mxu0 0.0
  %72 = vmatprep.subr.mxu0 0.0
  %73 = vmatpush1.msra.mxu0 0.0
  %74 = vmatprep.subr.mxu0 0.0
  %75 = vmatpush1.msra.mxu0 0.0
  %76 = vmatprep.subr.mxu0 0.0
  %77 = vmatpush1.msra.mxu0 0.0
  %78 = vmatprep.subr.mxu0 0.0
  %79 = vmatpush1.msra.mxu0 0.0
  %80 = vmatprep.subr.mxu0 0.0
  %81 = vmatpush1.msra.mxu0 0.0
  %82 = vmatprep.subr.mxu0 0.0
  %83 = vmatpush1.msra.mxu0 0.0
  %84 = vmatprep.subr.mxu0 0.0
  %85 = vmatpush1.msra.mxu0 0.0
  %86 = vmatprep.subr.mxu0 0.0
  %87 = vmatpush1.msra.mxu0 0.0
  %88 = vmatprep.subr.mxu0 0.0
  %89 = vmatpush1.msra.mxu0 0.0
  %90 = vmatprep.subr.mxu0 0.0
  %91 = vmatpush1.msra.mxu0 0.0
  %92 = vmatprep.subr.mxu0 0.0
  %93 = vmatpush1.msra.mxu0 0.0
  %94 = vmatprep.subr.mxu0 0.0
  %95 = vmatpush1.msra.mxu0 0.0
  %96 = vmatprep.subr.mxu0 0.0
  %97 = vmatpush1.msra.mxu0 0.0
  %98 = vmatprep.mubr.f32.mxu0 0.0
  %99 = vmatmul.mubr.f32.gmra.mrb[0].mxu0 %v32
  %v100 = vpop.f32.mrb[0].mxu0
  %v101 = vadd.f32 0.0, %v100
  %v102 = vpop.f32.mrb[0].mxu0
  %103 = vdwg.mxu0
  %v105 = vsel %vm30, %v26, 0
  %107 = vmatprep.subr.mxu0 0.0
  %108 = vmatpush1.msra.mxu0 %v27
  %109 = vmatprep.subr.mxu0 0.0
  %110 = vmatpush1.msra.mxu0 0.0
  %111 = vmatprep.subr.mxu0 0.0
  %112 = vmatpush1.msra.mxu0 0.0
  %113 = vmatprep.subr.mxu0 0.0
  %114 = vmatpush1.msra.mxu0 0.0
  %115 = vmatprep.subr.mxu0 0.0
  %116 = vmatpush1.msra.mxu0 0.0
  %117 = vmatprep.subr.mxu0 0.0
  %118 = vmatpush1.msra.mxu0 0.0
  %119 = vmatprep.subr.mxu0 0.0
  %120 = vmatpush1.msra.mxu0 0.0
  %121 = vmatprep.subr.mxu0 0.0
  %122 = vmatpush1.msra.mxu0 0.0
  %123 = vmatprep.subr.mxu0 0.0
  %124 = vmatpush1.msra.mxu0 0.0
  %125 = vmatprep.subr.mxu0 0.0
  %126 = vmatpush1.msra.mxu0 0.0
  %127 = vmatprep.subr.mxu0 0.0
  %128 = vmatpush1.msra.mxu0 0.0
  %129 = vmatprep.subr.mxu0 0.0
  %130 = vmatpush1.msra.mxu0 0.0
  %131 = vmatprep.subr.mxu0 0.0
  %132 = vmatpush1.msra.mxu0 0.0
  %133 = vmatprep.subr.mxu0 0.0
  %134 = vmatpush1.msra.mxu0 0.0
  %135 = vmatprep.subr.mxu0 0.0
  %136 = vmatpush1.msra.mxu0 0.0
  %137 = vmatprep.subr.mxu0 0.0
  %138 = vmatpush1.msra.mxu0 0.0
  %139 = vmatprep.subr.mxu0 0.0
  %140 = vmatpush1.msra.mxu0 0.0
  %141 = vmatprep.subr.mxu0 0.0
  %142 = vmatpush1.msra.mxu0 0.0
  %143 = vmatprep.subr.mxu0 0.0
  %144 = vmatpush1.msra.mxu0 0.0
  %145 = vmatprep.subr.mxu0 0.0
  %146 = vmatpush1.msra.mxu0 0.0
  %147 = vmatprep.subr.mxu0 0.0
  %148 = vmatpush1.msra.mxu0 0.0
  %149 = vmatprep.subr.mxu0 0.0
  %150 = vmatpush1.msra.mxu0 0.0
  %151 = vmatprep.subr.mxu0 0.0
  %152 = vmatpush1.msra.mxu0 0.0
  %153 = vmatprep.subr.mxu0 0.0
  %154 = vmatpush1.msra.mxu0 0.0
  %155 = vmatprep.subr.mxu0 0.0
  %156 = vmatpush1.msra.mxu0 0.0
  %157 = vmatprep.subr.mxu0 0.0
  %158 = vmatpush1.msra.mxu0 0.0
  %159 = vmatprep.subr.mxu0 0.0
  %160 = vmatpush1.msra.mxu0 0.0
  %161 = vmatprep.subr.mxu0 0.0
  %162 = vmatpush1.msra.mxu0 0.0
  %163 = vmatprep.subr.mxu0 0.0
  %164 = vmatpush1.msra.mxu0 0.0
  %165 = vmatprep.subr.mxu0 0.0
  %166 = vmatpush1.msra.mxu0 0.0
  %167 = vmatprep.subr.mxu0 0.0
  %168 = vmatpush1.msra.mxu0 0.0
  %169 = vmatprep.subr.mxu0 0.0
  %170 = vmatpush1.msra.mxu0 0.0
  %171 = vmatprep.mubr.f32.mxu0 0.0
  %172 = vmatmul.mubr.f32.gmra.mrb[0].mxu0 %v105
  %v173 = vpop.f32.mrb[0].mxu0
  %v174 = vadd.f32 %v101, %v173
  %v175 = vpop.f32.mrb[0].mxu0
  %176 = vdwg.mxu0
  %v177 = vld [vmem:[%s4] sm:$0x1]
  %v179 = vlaneseq
  %v180 = vshrl.u32 %v179, 7
  %v181 = vsub.s32 0, %v180
  %v182 = vrot.slane %v177, %v181
  %v184 = vadd.f32 %v174, %v182
  %v185 = vmax.f32 %v184, 0.0
  %v186 = vld [vmem:[%s5] sm:$0xff]
  %v187 = vld [vmem:[%s5 + $0x8] sm:$0xff]
  %v188 = vld [vmem:[%s5 + $0x10] sm:$0xff]
  %v189 = vld [vmem:[%s5 + $0x18] sm:$0xff]
  %v190 = vld [vmem:[%s6] sm:$0x1]
  %v192 = vlaneseq
  %v193 = vshrl.u32 %v192, 7
  %v194 = vsub.s32 0, %v193
  %v195 = vrot.slane %v190, %v194
  %vm197 = vcmask 261120
  %v199 = vsel %vm197, %v185, 0
  %201 = vmatprep.subr.mxu0 0.0
  %202 = vmatpush1.msra.mxu0 %v186
  %203 = vmatprep.subr.mxu0 0.0
  %204 = vmatpush1.msra.mxu0 %v187
  %205 = vmatprep.subr.mxu0 0.0
  %206 = vmatpush1.msra.mxu0 %v188
  %207 = vmatprep.subr.mxu0 0.0
  %208 = vmatpush1.msra.mxu0 %v189
  %209 = vmatprep.subr.mxu0 0.0
  %210 = vmatpush1.msra.mxu0 0.0
  %211 = vmatprep.subr.mxu0 0.0
  %212 = vmatpush1.msra.mxu0 0.0
  %213 = vmatprep.subr.mxu0 0.0
  %214 = vmatpush1.msra.mxu0 0.0
  %215 = vmatprep.subr.mxu0 0.0
  %216 = vmatpush1.msra.mxu0 0.0
  %217 = vmatprep.subr.mxu0 0.0
  %218 = vmatpush1.msra.mxu0 0.0
  %219 = vmatprep.subr.mxu0 0.0
  %220 = vmatpush1.msra.mxu0 0.0
  %221 = vmatprep.subr.mxu0 0.0
  %222 = vmatpush1.msra.mxu0 0.0
  %223 = vmatprep.subr.mxu0 0.0
  %224 = vmatpush1.msra.mxu0 0.0
  %225 = vmatprep.subr.mxu0 0.0
  %226 = vmatpush1.msra.mxu0 0.0
  %227 = vmatprep.subr.mxu0 0.0
  %228 = vmatpush1.msra.mxu0 0.0
  %229 = vmatprep.subr.mxu0 0.0
  %230 = vmatpush1.msra.mxu0 0.0
  %231 = vmatprep.subr.mxu0 0.0
  %232 = vmatpush1.msra.mxu0 0.0
  %233 = vmatprep.subr.mxu0 0.0
  %234 = vmatpush1.msra.mxu0 0.0
  %235 = vmatprep.subr.mxu0 0.0
  %236 = vmatpush1.msra.mxu0 0.0
  %237 = vmatprep.subr.mxu0 0.0
  %238 = vmatpush1.msra.mxu0 0.0
  %239 = vmatprep.subr.mxu0 0.0
  %240 = vmatpush1.msra.mxu0 0.0
  %241 = vmatprep.subr.mxu0 0.0
  %242 = vmatpush1.msra.mxu0 0.0
  %243 = vmatprep.subr.mxu0 0.0
  %244 = vmatpush1.msra.mxu0 0.0
  %245 = vmatprep.subr.mxu0 0.0
  %246 = vmatpush1.msra.mxu0 0.0
  %247 = vmatprep.subr.mxu0 0.0
  %248 = vmatpush1.msra.mxu0 0.0
  %249 = vmatprep.subr.mxu0 0.0
  %250 = vmatpush1.msra.mxu0 0.0
  %251 = vmatprep.subr.mxu0 0.0
  %252 = vmatpush1.msra.mxu0 0.0
  %253 = vmatprep.subr.mxu0 0.0
  %254 = vmatpush1.msra.mxu0 0.0
  %255 = vmatprep.subr.mxu0 0.0
  %256 = vmatpush1.msra.mxu0 0.0
  %257 = vmatprep.subr.mxu0 0.0
  %258 = vmatpush1.msra.mxu0 0.0
  %259 = vmatprep.subr.mxu0 0.0
  %260 = vmatpush1.msra.mxu0 0.0
  %261 = vmatprep.subr.mxu0 0.0
  %262 = vmatpush1.msra.mxu0 0.0
  %263 = vmatprep.subr.mxu0 0.0
  %264 = vmatpush1.msra.mxu0 0.0
  %265 = vmatprep.mubr.f32.mxu0 0.0
  %266 = vmatmul.mubr.f32.gmra.mrb[0].mxu0 %v199
  %v267 = vpop.f32.mrb[0].mxu0
  %v268 = vadd.f32 %v195, %v267
  %v269 = vpop.f32.mrb[0].mxu0
  %270 = vdwg.mxu0
  %271 = vmax.xlane.f32.xlu0 %v268
  %v272 = vpop.xlane.xlu0 %271
  %v273 = vsub.f32 %v268, %v272
  %v274 = vmul.f32 %v273, 1.442695
  %v275 = vpow.pop %v274
  %276 = vadd.xlane.f32.xlu0 %v275
  %v277 = vpop.xlane.xlu0 %276
  %v278 = vlog2.pop %v277
  %v279 = vmul.f32 %v278, 0.6931472
  %v280 = vsub.f32 %v273, %v279
  %281 = vst [vmem:[%s7] sm:$0xff] %v280
  // Predicated region
  $region30: #{net_forward.1} parent=0 // pred_check
    _
  $region31: #{net_forward.1} parent=0 // pred_check_branch
    %283 = sbr.rel (0) target = $region33
  $region32: #{net_forward.1} parent=0 // pred_region
    _
  $region33: #{net_forward.1} parent=0 // pred_fallthru
    _
  // Predicated region
  $region34: #{net_forward.1} parent=0 // pred_check
    _
  $region35: #{net_forward.1} parent=0 // pred_check_branch
    %285 = sbr.rel (0) target = $region37
  $region36: #{net_forward.1} parent=0 // pred_region
    _
  $region37: #{net_forward.1} parent=0 // pred_fallthru
    _

</llo_original>
